<compile_context>
chip_gen: v6e
topology: v6e:2x2x1
jax: 0.10.0
libtpu: 0.0.40
codegen_flags: <defaults>
</compile_context>

<pallas_src>
import functools

import jax
import jax.numpy as jnp
from jax.experimental import pallas as pl
from jax.experimental.pallas import tpu as pltpu

_MiB = 1024 * 1024
_SLAB_TARGET_BYTES = 256 * 1024   # per-slab relayout working set inside the kernel
_MAX_SLABS = 32                   # bound on static unrolling / code size


def _round_up(x, m):
    return ((x + m - 1) // m) * m


def _round_down_pos(x, m):
    return max((x // m) * m, m)


# --------------------------------------------------------------------------
# Kernel bodies (pure relayout, processed in static column slabs).
# --------------------------------------------------------------------------
def _squeeze_fwd_kernel(x_ref, o_ref, *, factor, slabs):
    """out[r*factor + j, t] = in[r, t*factor + j]."""
    rb = x_ref.shape[0]
    for off, size in slabs:                      # static offsets/sizes
        x = x_ref[:, off:off + size]
        y = x.reshape(rb, size // factor, factor)
        y = jnp.transpose(y, (0, 2, 1))          # (rb, factor, size//factor)
        o_ref[:, off // factor:(off + size) // factor] = (
            y.reshape(rb * factor, size // factor))


def _squeeze_rev_kernel(x_ref, o_ref, *, factor, slabs):
    """out[r, t*factor + j] = in[r*factor + j, t]."""
    rb = x_ref.shape[0]
    for off, size in slabs:                      # static offsets/sizes
        x = x_ref[:, off:off + size]
        y = x.reshape(rb // factor, factor, size)
        y = jnp.transpose(y, (0, 2, 1))          # (rb//factor, size, factor)
        o_ref[:, off * factor:(off + size) * factor] = (
            y.reshape(rb // factor, size * factor))


# --------------------------------------------------------------------------
# Tiling / budget helpers.
# --------------------------------------------------------------------------
def _vmem_budget(tile_budget_bytes):
    """(tile_budget_bytes, vmem_limit_bytes) derived from the chip's VMEM."""
    cap = None
    try:
        cap = getattr(pltpu.get_tpu_info(), "vmem_capacity_bytes", None)
    except Exception:        # not a TPU / API drift -> conservative branch
        cap = None
    if cap is not None and cap >= 100 * _MiB:
        budget, limit = 8 * _MiB, 80 * _MiB      # v5e / v6e class (128 MiB VMEM)
    else:
        budget, limit = 4 * _MiB, 40 * _MiB      # v7x class (64 MiB VMEM) / unknown
    if tile_budget_bytes is not None:
        budget = tile_budget_bytes
    return budget, limit


def _select_tiles(R, T, itemsize, row_align, col_align, budget_bytes):
    """Pick (rb, tt): aligned blocks sized by a byte budget, lane axis first."""
    rb = R if R <= row_align else row_align
    max_cols = max(budget_bytes // max(rb * itemsize, 1), col_align)
    if T <= max_cols:
        tt = T                                    # full extent: always legal
    else:
        tt = _round_down_pos(max_cols, col_align)
    if R > row_align:                             # leftover budget -> rows
        max_rows = max(budget_bytes // max(tt * itemsize, 1), row_align)
        rb = min(_round_up(R, row_align), _round_down_pos(max_rows, row_align))
        if rb >= R:
            rb = R
    return rb, tt


def _maybe_split_for_megacore(R, T, rb, tt, itemsize, col_align):
    """Split a single-block grid along time so both v7x TensorCores get work."""
    one_block = (-(-R // rb)) * (-(-T // tt)) == 1
    if one_block and R * T * itemsize > 2 * _MiB and tt > col_align:
        tt = max(_round_up(-(-tt // 2), col_align), col_align)
    return tt


def _make_slabs(rb, tt, itemsize, col_align, slab_bytes):
    """Static (offset, size) column slabs bounding the in-kernel working set."""
    slab = max(slab_bytes // max(rb * itemsize, 1), col_align)
    slab = _round_down_pos(slab, col_align)
    slab = max(slab, _round_up(-(-tt // _MAX_SLABS), col_align))
    if slab >= tt:
        return ((0, tt),)
    slabs, off = [], 0
    while off < tt:
        size = min(slab, tt - off)
        slabs.append((off, size))
        off += size
    return tuple(slabs)


# --------------------------------------------------------------------------
# Public wrapper (matches SqueezeLayer.forward semantics).
# --------------------------------------------------------------------------
def squeeze_layer(x, factor, logdet=None, reverse=False, *,
                  tile_budget_bytes=None, slab_bytes=_SLAB_TARGET_BYTES):
    """Pallas TPU implementation of WaveGlow SqueezeLayer.forward.

    forward: (B, C, T) -> (B, C*factor, T//factor)
    reverse: (B, C, T) -> (B, C//factor, T*factor)
    logdet passes through unchanged (the squeeze is volume preserving).
    """
    B, C, T = x.shape
    itemsize = x.dtype.itemsize
    sublane = 8 * max(1, 4 // itemsize)           # 8 rows f32, 16 bf16, 32 int8

    budget, vmem_limit = _vmem_budget(tile_budget_bytes)

    # Fold batch into the row (channel) dim: free reshape on contiguous data;
    # keeps sublanes full even when C is small (C=4..8 in early WaveGlow).
    R = B * C
    x2 = x.reshape(R, T)

    if not reverse:
        assert T % factor == 0, "time length must be divisible by factor"
        row_align = sublane
        col_align = factor * 128   # keeps the *output* lane dim a 128-multiple
        rb, tt = _select_tiles(R, T, itemsize, row_align, col_align, budget)
        tt = _maybe_split_for_megacore(R, T, rb, tt, itemsize, col_align)
        slabs = _make_slabs(rb, tt, itemsize, col_align, slab_bytes)
        grid = (pl.cdiv(R, rb), pl.cdiv(T, tt))
        in_spec = pl.BlockSpec((rb, tt), lambda r, t: (r, t))
        out_spec = pl.BlockSpec((rb * factor, tt // factor), lambda r, t: (r, t))
        out2_shape = (R * factor, T // factor)
        kernel = functools.partial(_squeeze_fwd_kernel, factor=factor, slabs=slabs)
        final_shape = (B, C * factor, T // factor)
    else:
        assert C % factor == 0, "channels must be divisible by factor"
        row_align = factor * sublane   # output block keeps full sublanes
        col_align = 128
        rb, tt = _select_tiles(R, T, itemsize, row_align, col_align, budget)
        tt = _maybe_split_for_megacore(R, T, rb, tt, itemsize, col_align)
        slabs = _make_slabs(rb, tt, itemsize, col_align, slab_bytes)
        grid = (pl.cdiv(R, rb), pl.cdiv(T, tt))
        in_spec = pl.BlockSpec((rb, tt), lambda r, t: (r, t))
        out_spec = pl.BlockSpec((rb // factor, tt * factor), lambda r, t: (r, t))
        out2_shape = (R // factor, T * factor)
        kernel = functools.partial(_squeeze_rev_kernel, factor=factor, slabs=slabs)
        final_shape = (B, C // factor, T * factor)

    out2 = pl.pallas_call(
        kernel,
        out_shape=jax.ShapeDtypeStruct(out2_shape, x.dtype),
        grid_spec=pltpu.PrefetchScalarGridSpec(
            num_scalar_prefetch=0,
            grid=grid,
            in_specs=[in_spec],
            out_specs=out_spec,
        ),
        compiler_params=pltpu.CompilerParams(
            dimension_semantics=("parallel", "parallel"),
            vmem_limit_bytes=vmem_limit,
        ),
    )(x2)
    # Free reshape back to the (B, C', T') convention.
    return out2.reshape(final_shape), logdet


# --------------------------------------------------------------------------
# Pure-JAX references and self-test.
# --------------------------------------------------------------------------
def _ref_forward(x, factor):
    B, C, T = x.shape
    y = x.reshape(B, C, T // factor, factor)
    y = jnp.transpose(y, (0, 1, 3, 2))
    return y.reshape(B, C * factor, T // factor)


def _ref_reverse(x, factor):
    B, C, T = x.shape
    y = x.reshape(B, C // factor, factor, T)
    y = jnp.transpose(y, (0, 1, 3, 2))
    return y.reshape(B, C // factor, T * factor)


if __name__ == "__main__":
    # Case 1: small shapes, default (chip-derived) budgets.
    B, C, T, factor = 2, 4, 16, 2
    x = jax.random.normal(jax.random.PRNGKey(0), (B, C, T), dtype=jnp.float32)
    y, logdet = squeeze_layer(x, factor, logdet=None, reverse=False)
    y = jax.block_until_ready(y)
    assert y.shape == (B, C * factor, T // factor)
    assert logdet is None
    assert bool(jnp.array_equal(y, _ref_forward(x, factor)))

    z, _ = squeeze_layer(y, factor, logdet=None, reverse=True)
    z = jax.block_until_ready(z)
    assert z.shape == (B, C, T)
    assert bool(jnp.array_equal(z, _ref_reverse(y, factor)))
    assert bool(jnp.array_equal(z, x))

    # Case 2: time axis not a multiple of the tile — exercises the cdiv grid
    # (ragged last block), the multi-slab in-kernel relayout, and multi-step
    # pipelining, with tiny forced budgets so shapes stay small.
    B, C, T, factor = 2, 4, 4000, 2
    x = jax.random.normal(jax.random.PRNGKey(1), (B, C, T), dtype=jnp.float32)
    y, _ = squeeze_layer(x, factor, reverse=False,
                         tile_budget_bytes=32 * 1024, slab_bytes=8 * 1024)
    y = jax.block_until_ready(y)
    assert y.shape == (B, C * factor, T // factor)
    assert bool(jnp.array_equal(y, _ref_forward(x, factor)))

    z, _ = squeeze_layer(y, factor, reverse=True,
                         tile_budget_bytes=32 * 1024, slab_bytes=8 * 1024)
    z = jax.block_until_ready(z)
    assert z.shape == (B, C, T)
    assert bool(jnp.array_equal(z, x))

    # Case 3: factor=4 round trip with default budgets.
    B, C, T, factor = 2, 2, 1024, 4
    x = jax.random.normal(jax.random.PRNGKey(2), (B, C, T), dtype=jnp.float32)
    y, _ = squeeze_layer(x, factor, reverse=False)
    y = jax.block_until_ready(y)
    assert bool(jnp.array_equal(y, _ref_forward(x, factor)))
    z, _ = squeeze_layer(y, factor, reverse=True)
    assert bool(jnp.array_equal(jax.block_until_ready(z), x))

    print("KERNEL_OK")
</pallas_src>

<mosaic_0001>
module attributes {stable_mosaic.version = 11 : i64} {
  func.func @_squeeze_fwd_kernel(%arg0: i32, %arg1: i32, %arg2: memref<8x16xf32, #tpu.memory_space<vmem>>, %arg3: memref<16x8xf32, #tpu.memory_space<vmem>>) attributes {dimension_semantics = [#tpu.dimension_semantics<parallel>, #tpu.dimension_semantics<parallel>], iteration_bounds = array<i64: 1, 1>, scalar_prefetch = 0 : i64, scratch_operands = 0 : i64, tpu.core_type = #tpu.core_type<tc>, window_params = [{transform_indices = @transform_0, window_bounds = array<i64: 8, 16>}, {transform_indices = @transform_1, window_bounds = array<i64: 16, 8>}]} {
    %c0 = arith.constant 0 : index
    %c0_0 = arith.constant 0 : index
    %0 = vector.load %arg2[%c0, %c0_0] : memref<8x16xf32, #tpu.memory_space<vmem>>, vector<8x16xf32>
    %1 = vector.shape_cast %0 : vector<8x16xf32> to vector<8x8x2xf32>
    %2 = tpu.transpose %1, [0, 2, 1] : vector<8x8x2xf32> -> vector<8x2x8xf32>
    %3 = vector.shape_cast %2 : vector<8x2x8xf32> to vector<16x8xf32>
    %c0_1 = arith.constant 0 : index
    %c0_2 = arith.constant 0 : index
    %4 = vector.load %arg3[%c0_1, %c0_2] : memref<16x8xf32, #tpu.memory_space<vmem>>, vector<16x8xf32>
    tpu.vector_store %arg3[%c0_1, %c0_2], %3 {strides = array<i32>} : memref<16x8xf32, #tpu.memory_space<vmem>>, vector<16x8xf32>,
    return
  }
  func.func @transform_0(%arg0: i32, %arg1: i32) -> (i32, i32) {
    %c0_i32 = arith.constant 0 : i32
    return %arg0, %arg1 : i32, i32
  }
  func.func @transform_1(%arg0: i32, %arg1: i32) -> (i32, i32) {
    %c0_i32 = arith.constant 0 : i32
    return %arg0, %arg1 : i32, i32
  }
}

</mosaic_0001>

<llo_original>
// kernel: tpu_custom_call.1
$region0: #{tpu_custom_call.1}
  #allocation0 [shape = 'u32[]', space=smem, size = 0x4, offset = 0x4, fixed_abs, tag = 'smem constant byte address 0x4 - core index']
  #allocation1 [shape = 'u32[144,128]{1,0:T(1,128)}', space=vmem, size = 0x12000, scoped, tag = 'internal scratch']
  %s0 = inlined_call_operand.hbm [shape: f32[8,16], index: 0, kind: input, shape index: {}]
  %s1 = inlined_call_operand.vmem [shape: f32[16,8], index: 1, kind: output, shape index: {}]
  %s2 = sld [smem:[#allocation0]]
  $region18: #{tpu_custom_call.1} parent=0
    _
  %s4 = ssub.s32 1, %s2
  %s5 = scalar_select 0, %s4, %s2
  $region1: #{tpu_custom_call.1} parent=0
    #allocation2 [shape = 'u8[4096]{0}', space=vmem, size = 0x1000, scoped, tag = 'input window, operand 0, single buffered']
    #allocation3 [shape = 's32[1]{0}', space=sflag, size = 0x4, scoped, tag = 'scoped memory for tpu_custom_call.1']
    %6 = vsyncpa [#allocation3], 0
    // Predicated region
    $region2: #{tpu_custom_call.1} parent=1 // pred_check
      _
    $region3: #{tpu_custom_call.1} parent=1 // pred_check_branch
      %8 = sbr.rel (0) target = $region5
    $region4: #{tpu_custom_call.1} parent=1 // pred_region
      %s10 = ssub.s32 128, 128
      %11 = vsyncadd [#allocation3], %s10
      %s13 = sshll.u32 [#allocation2], 4
      %s14 = int_to_ptr.vmem [resolvable:$true] %s13
      %16 = dma.hbm_to_vmem [thread:$0]  %s0, 128, %s14, [#allocation3]
    $region5: #{tpu_custom_call.1} parent=1 // pred_fallthru
      _
    // Predicated region
    $region6: #{tpu_custom_call.1} parent=1 // pred_check
      _
    $region7: #{tpu_custom_call.1} parent=1 // pred_check_branch
      %18 = sbr.rel (0) target = $region9
    $region8: #{tpu_custom_call.1} parent=1 // pred_region
      %19 = dma.done [#allocation3], 128
    $region9: #{tpu_custom_call.1} parent=1 // pred_fallthru
      _
    %v20 = vld [vmem:[#allocation2] sm:$0xff]
    %22 = vrot.lane.b32.xlu0 %v20, 126
    %v23 = vpop.permute.xlu0 %22
    %25 = vrot.lane.b32.xlu0 %v20, 124
    %v26 = vpop.permute.xlu0 %25
    %28 = vrot.lane.b32.xlu0 %v20, 122
    %v29 = vpop.permute.xlu0 %28
    %31 = vrot.lane.b32.xlu0 %v20, 120
    %v32 = vpop.permute.xlu0 %31
    %34 = vrot.lane.b32.xlu0 %v20, 118
    %v35 = vpop.permute.xlu0 %34
    %37 = vrot.lane.b32.xlu0 %v20, 116
    %v38 = vpop.permute.xlu0 %37
    %40 = vrot.lane.b32.xlu0 %v20, 114
    %v41 = vpop.permute.xlu0 %40
    %v43 = vcombine.low %v20, %v26
    %v44 = vcombine.high %v20, %v26
    %v46 = vunpack.c.l.s4 1983009808
    %v47 = vunpack.c.0.s8 %v46
    %v48 = vlaneseq
    %v49 = vshrl.u32 %v48, 7
    %v50 = vsub.s32 %v47, %v49
    %v51 = vrot.slane %v43, %v50
    %v53 = vunpack.c.l.s4 1983009808
    %v54 = vunpack.c.0.s8 %v53
    %v55 = vlaneseq
    %v56 = vshrl.u32 %v55, 7
    %v57 = vsub.s32 %v54, %v56
    %v58 = vrot.slane %v44, %v57
    %v59 = vcombine.low %v23, %v29
    %v60 = vcombine.high %v23, %v29
    %v62 = vunpack.c.l.s4 1983009808
    %v63 = vunpack.c.0.s8 %v62
    %v64 = vlaneseq
    %v65 = vshrl.u32 %v64, 7
    %v66 = vsub.s32 %v63, %v65
    %v67 = vrot.slane %v59, %v66
    %v69 = vunpack.c.l.s4 1983009808
    %v70 = vunpack.c.0.s8 %v69
    %v71 = vlaneseq
    %v72 = vshrl.u32 %v71, 7
    %v73 = vsub.s32 %v70, %v72
    %v74 = vrot.slane %v60, %v73
    %v75 = vcombine.low %v32, %v38
    %v76 = vcombine.high %v32, %v38
    %v78 = vunpack.c.l.s4 1983009808
    %v79 = vunpack.c.0.s8 %v78
    %v80 = vlaneseq
    %v81 = vshrl.u32 %v80, 7
    %v82 = vsub.s32 %v79, %v81
    %v83 = vrot.slane %v75, %v82
    %v85 = vunpack.c.l.s4 1983009808
    %v86 = vunpack.c.0.s8 %v85
    %v87 = vlaneseq
    %v88 = vshrl.u32 %v87, 7
    %v89 = vsub.s32 %v86, %v88
    %v90 = vrot.slane %v76, %v89
    %v91 = vcombine.low %v35, %v41
    %v92 = vcombine.high %v35, %v41
    %v94 = vunpack.c.l.s4 1983009808
    %v95 = vunpack.c.0.s8 %v94
    %v96 = vlaneseq
    %v97 = vshrl.u32 %v96, 7
    %v98 = vsub.s32 %v95, %v97
    %v99 = vrot.slane %v91, %v98
    %v101 = vunpack.c.l.s4 1983009808
    %v102 = vunpack.c.0.s8 %v101
    %v103 = vlaneseq
    %v104 = vshrl.u32 %v103, 7
    %v105 = vsub.s32 %v102, %v104
    %v106 = vrot.slane %v92, %v105
    %v107 = vcombine.low %v51, %v67
    %v108 = vcombine.high %v51, %v67
    %v110 = vunpack.c.l.s4 1934713408
    %v111 = vunpack.c.0.s8 %v110
    %v112 = vlaneseq
    %v113 = vshrl.u32 %v112, 7
    %v114 = vsub.s32 %v111, %v113
    %v115 = vrot.slane %v107, %v114
    %v117 = vunpack.c.l.s4 1934713408
    %v118 = vunpack.c.0.s8 %v117
    %v119 = vlaneseq
    %v120 = vshrl.u32 %v119, 7
    %v121 = vsub.s32 %v118, %v120
    %v122 = vrot.slane %v108, %v121
    %v123 = vcombine.low %v58, %v74
    %v124 = vcombine.high %v58, %v74
    %v126 = vunpack.c.l.s4 1934713408
    %v127 = vunpack.c.0.s8 %v126
    %v128 = vlaneseq
    %v129 = vshrl.u32 %v128, 7
    %v130 = vsub.s32 %v127, %v129
    %v131 = vrot.slane %v123, %v130
    %v133 = vunpack.c.l.s4 1934713408
    %v134 = vunpack.c.0.s8 %v133
    %v135 = vlaneseq
    %v136 = vshrl.u32 %v135, 7
    %v137 = vsub.s32 %v134, %v136
    %v138 = vrot.slane %v124, %v137
    %v139 = vcombine.low %v83, %v99
    %v140 = vcombine.high %v83, %v99
    %v142 = vunpack.c.l.s4 1934713408
    %v143 = vunpack.c.0.s8 %v142
    %v144 = vlaneseq
    %v145 = vshrl.u32 %v144, 7
    %v146 = vsub.s32 %v143, %v145
    %v147 = vrot.slane %v139, %v146
    %v149 = vunpack.c.l.s4 1934713408
    %v150 = vunpack.c.0.s8 %v149
    %v151 = vlaneseq
    %v152 = vshrl.u32 %v151, 7
    %v153 = vsub.s32 %v150, %v152
    %v154 = vrot.slane %v140, %v153
    %v155 = vcombine.low %v90, %v106
    %v156 = vcombine.high %v90, %v106
    %v158 = vunpack.c.l.s4 1934713408
    %v159 = vunpack.c.0.s8 %v158
    %v160 = vlaneseq
    %v161 = vshrl.u32 %v160, 7
    %v162 = vsub.s32 %v159, %v161
    %v163 = vrot.slane %v155, %v162
    %v165 = vunpack.c.l.s4 1934713408
    %v166 = vunpack.c.0.s8 %v165
    %v167 = vlaneseq
    %v168 = vshrl.u32 %v167, 7
    %v169 = vsub.s32 %v166, %v168
    %v170 = vrot.slane %v156, %v169
    %v171 = vcombine.low %v115, %v147
    %v172 = vcombine.high %v115, %v147
    %v173 = vcombine.low %v122, %v154
    %v174 = vcombine.high %v122, %v154
    %v175 = vcombine.low %v131, %v163
    %v176 = vcombine.high %v131, %v163
    %v177 = vcombine.low %v138, %v170
    %v178 = vcombine.high %v138, %v170
    %179 = vxpose.xlu0.b32.start [1/16] %v171, 128
    %180 = vxpose.xlu0.b32.cont [2/16] 0.0, 128
    %181 = vxpose.xlu0.b32.cont [3/16] 0.0, 128
    %182 = vxpose.xlu0.b32.cont [4/16] 0.0, 128
    %183 = vxpose.xlu0.b32.cont [5/16] 0.0, 128
    %184 = vxpose.xlu0.b32.cont [6/16] 0.0, 128
    %185 = vxpose.xlu0.b32.cont [7/16] 0.0, 128
    %186 = vxpose.xlu0.b32.cont [8/16] 0.0, 128
    %187 = vxpose.xlu0.b32.cont [9/16] 0.0, 128
    %188 = vxpose.xlu0.b32.cont [10/16] 0.0, 128
    %189 = vxpose.xlu0.b32.cont [11/16] 0.0, 128
    %190 = vxpose.xlu0.b32.cont [12/16] 0.0, 128
    %191 = vxpose.xlu0.b32.cont [13/16] 0.0, 128
    %192 = vxpose.xlu0.b32.cont [14/16] 0.0, 128
    %193 = vxpose.xlu0.b32.cont [15/16] 0.0, 128
    %194 = vxpose.xlu0.b32.end [16/16] 0.0, 128
    %v195 = vpop.trf.xlu0
    %v196 = vpop.trf.xlu0
    %v197 = vpop.trf.xlu0
    %v198 = vpop.trf.xlu0
    %v199 = vpop.trf.xlu0
    %v200 = vpop.trf.xlu0
    %v201 = vpop.trf.xlu0
    %v202 = vpop.trf.xlu0
    %v203 = vpop.trf.xlu0
    %v204 = vpop.trf.xlu0
    %v205 = vpop.trf.xlu0
    %v206 = vpop.trf.xlu0
    %v207 = vpop.trf.xlu0
    %v208 = vpop.trf.xlu0
    %v209 = vpop.trf.xlu0
    %v210 = vpop.trf.xlu0
    %211 = vxpose.xlu0.b32.start [1/16] %v172, 128
    %212 = vxpose.xlu0.b32.cont [2/16] 0.0, 128
    %213 = vxpose.xlu0.b32.cont [3/16] 0.0, 128
    %214 = vxpose.xlu0.b32.cont [4/16] 0.0, 128
    %215 = vxpose.xlu0.b32.cont [5/16] 0.0, 128
    %216 = vxpose.xlu0.b32.cont [6/16] 0.0, 128
    %217 = vxpose.xlu0.b32.cont [7/16] 0.0, 128
    %218 = vxpose.xlu0.b32.cont [8/16] 0.0, 128
    %219 = vxpose.xlu0.b32.cont [9/16] 0.0, 128
    %220 = vxpose.xlu0.b32.cont [10/16] 0.0, 128
    %221 = vxpose.xlu0.b32.cont [11/16] 0.0, 128
    %222 = vxpose.xlu0.b32.cont [12/16] 0.0, 128
    %223 = vxpose.xlu0.b32.cont [13/16] 0.0, 128
    %224 = vxpose.xlu0.b32.cont [14/16] 0.0, 128
    %225 = vxpose.xlu0.b32.cont [15/16] 0.0, 128
    %226 = vxpose.xlu0.b32.end [16/16] 0.0, 128
    %v227 = vpop.trf.xlu0
    %v228 = vpop.trf.xlu0
    %v229 = vpop.trf.xlu0
    %v230 = vpop.trf.xlu0
    %v231 = vpop.trf.xlu0
    %v232 = vpop.trf.xlu0
    %v233 = vpop.trf.xlu0
    %v234 = vpop.trf.xlu0
    %v235 = vpop.trf.xlu0
    %v236 = vpop.trf.xlu0
    %v237 = vpop.trf.xlu0
    %v238 = vpop.trf.xlu0
    %v239 = vpop.trf.xlu0
    %v240 = vpop.trf.xlu0
    %v241 = vpop.trf.xlu0
    %v242 = vpop.trf.xlu0
    %243 = vxpose.xlu0.b32.start [1/16] %v173, 128
    %244 = vxpose.xlu0.b32.cont [2/16] 0.0, 128
    %245 = vxpose.xlu0.b32.cont [3/16] 0.0, 128
    %246 = vxpose.xlu0.b32.cont [4/16] 0.0, 128
    %247 = vxpose.xlu0.b32.cont [5/16] 0.0, 128
    %248 = vxpose.xlu0.b32.cont [6/16] 0.0, 128
    %249 = vxpose.xlu0.b32.cont [7/16] 0.0, 128
    %250 = vxpose.xlu0.b32.cont [8/16] 0.0, 128
    %251 = vxpose.xlu0.b32.cont [9/16] 0.0, 128
    %252 = vxpose.xlu0.b32.cont [10/16] 0.0, 128
    %253 = vxpose.xlu0.b32.cont [11/16] 0.0, 128
    %254 = vxpose.xlu0.b32.cont [12/16] 0.0, 128
    %255 = vxpose.xlu0.b32.cont [13/16] 0.0, 128
    %256 = vxpose.xlu0.b32.cont [14/16] 0.0, 128
    %257 = vxpose.xlu0.b32.cont [15/16] 0.0, 128
    %258 = vxpose.xlu0.b32.end [16/16] 0.0, 128
    %v259 = vpop.trf.xlu0
    %v260 = vpop.trf.xlu0
    %v261 = vpop.trf.xlu0
    %v262 = vpop.trf.xlu0
    %v263 = vpop.trf.xlu0
    %v264 = vpop.trf.xlu0
    %v265 = vpop.trf.xlu0
    %v266 = vpop.trf.xlu0
    %v267 = vpop.trf.xlu0
    %v268 = vpop.trf.xlu0
    %v269 = vpop.trf.xlu0
    %v270 = vpop.trf.xlu0
    %v271 = vpop.trf.xlu0
    %v272 = vpop.trf.xlu0
    %v273 = vpop.trf.xlu0
    %v274 = vpop.trf.xlu0
    %275 = vxpose.xlu0.b32.start [1/16] %v174, 128
    %276 = vxpose.xlu0.b32.cont [2/16] 0.0, 128
    %277 = vxpose.xlu0.b32.cont [3/16] 0.0, 128
    %278 = vxpose.xlu0.b32.cont [4/16] 0.0, 128
    %279 = vxpose.xlu0.b32.cont [5/16] 0.0, 128
    %280 = vxpose.xlu0.b32.cont [6/16] 0.0, 128
    %281 = vxpose.xlu0.b32.cont [7/16] 0.0, 128
    %282 = vxpose.xlu0.b32.cont [8/16] 0.0, 128
    %283 = vxpose.xlu0.b32.cont [9/16] 0.0, 128
    %284 = vxpose.xlu0.b32.cont [10/16] 0.0, 128
    %285 = vxpose.xlu0.b32.cont [11/16] 0.0, 128
    %286 = vxpose.xlu0.b32.cont [12/16] 0.0, 128
    %287 = vxpose.xlu0.b32.cont [13/16] 0.0, 128
    %288 = vxpose.xlu0.b32.cont [14/16] 0.0, 128
    %289 = vxpose.xlu0.b32.cont [15/16] 0.0, 128
    %290 = vxpose.xlu0.b32.end [16/16] 0.0, 128
    %v291 = vpop.trf.xlu0
    %v292 = vpop.trf.xlu0
    %v293 = vpop.trf.xlu0
    %v294 = vpop.trf.xlu0
    %v295 = vpop.trf.xlu0
    %v296 = vpop.trf.xlu0
    %v297 = vpop.trf.xlu0
    %v298 = vpop.trf.xlu0
    %v299 = vpop.trf.xlu0
    %v300 = vpop.trf.xlu0
    %v301 = vpop.trf.xlu0
    %v302 = vpop.trf.xlu0
    %v303 = vpop.trf.xlu0
    %v304 = vpop.trf.xlu0
    %v305 = vpop.trf.xlu0
    %v306 = vpop.trf.xlu0
    %307 = vxpose.xlu0.b32.start [1/16] %v175, 128
    %308 = vxpose.xlu0.b32.cont [2/16] 0.0, 128
    %309 = vxpose.xlu0.b32.cont [3/16] 0.0, 128
    %310 = vxpose.xlu0.b32.cont [4/16] 0.0, 128
    %311 = vxpose.xlu0.b32.cont [5/16] 0.0, 128
    %312 = vxpose.xlu0.b32.cont [6/16] 0.0, 128
    %313 = vxpose.xlu0.b32.cont [7/16] 0.0, 128
    %314 = vxpose.xlu0.b32.cont [8/16] 0.0, 128
    %315 = vxpose.xlu0.b32.cont [9/16] 0.0, 128
    %316 = vxpose.xlu0.b32.cont [10/16] 0.0, 128
    %317 = vxpose.xlu0.b32.cont [11/16] 0.0, 128
    %318 = vxpose.xlu0.b32.cont [12/16] 0.0, 128
    %319 = vxpose.xlu0.b32.cont [13/16] 0.0, 128
    %320 = vxpose.xlu0.b32.cont [14/16] 0.0, 128
    %321 = vxpose.xlu0.b32.cont [15/16] 0.0, 128
    %322 = vxpose.xlu0.b32.end [16/16] 0.0, 128
    %v323 = vpop.trf.xlu0
    %v324 = vpop.trf.xlu0
    %v325 = vpop.trf.xlu0
    %v326 = vpop.trf.xlu0
    %v327 = vpop.trf.xlu0
    %v328 = vpop.trf.xlu0
    %v329 = vpop.trf.xlu0
    %v330 = vpop.trf.xlu0
    %v331 = vpop.trf.xlu0
    %v332 = vpop.trf.xlu0
    %v333 = vpop.trf.xlu0
    %v334 = vpop.trf.xlu0
    %v335 = vpop.trf.xlu0
    %v336 = vpop.trf.xlu0
    %v337 = vpop.trf.xlu0
    %v338 = vpop.trf.xlu0
    %339 = vxpose.xlu0.b32.start [1/16] %v176, 128
    %340 = vxpose.xlu0.b32.cont [2/16] 0.0, 128
    %341 = vxpose.xlu0.b32.cont [3/16] 0.0, 128
    %342 = vxpose.xlu0.b32.cont [4/16] 0.0, 128
    %343 = vxpose.xlu0.b32.cont [5/16] 0.0, 128
    %344 = vxpose.xlu0.b32.cont [6/16] 0.0, 128
    %345 = vxpose.xlu0.b32.cont [7/16] 0.0, 128
    %346 = vxpose.xlu0.b32.cont [8/16] 0.0, 128
    %347 = vxpose.xlu0.b32.cont [9/16] 0.0, 128
    %348 = vxpose.xlu0.b32.cont [10/16] 0.0, 128
    %349 = vxpose.xlu0.b32.cont [11/16] 0.0, 128
    %350 = vxpose.xlu0.b32.cont [12/16] 0.0, 128
    %351 = vxpose.xlu0.b32.cont [13/16] 0.0, 128
    %352 = vxpose.xlu0.b32.cont [14/16] 0.0, 128
    %353 = vxpose.xlu0.b32.cont [15/16] 0.0, 128
    %354 = vxpose.xlu0.b32.end [16/16] 0.0, 128
    %v355 = vpop.trf.xlu0
    %v356 = vpop.trf.xlu0
    %v357 = vpop.trf.xlu0
    %v358 = vpop.trf.xlu0
    %v359 = vpop.trf.xlu0
    %v360 = vpop.trf.xlu0
    %v361 = vpop.trf.xlu0
    %v362 = vpop.trf.xlu0
    %v363 = vpop.trf.xlu0
    %v364 = vpop.trf.xlu0
    %v365 = vpop.trf.xlu0
    %v366 = vpop.trf.xlu0
    %v367 = vpop.trf.xlu0
    %v368 = vpop.trf.xlu0
    %v369 = vpop.trf.xlu0
    %v370 = vpop.trf.xlu0
    %371 = vxpose.xlu0.b32.start [1/16] %v177, 128
    %372 = vxpose.xlu0.b32.cont [2/16] 0.0, 128
    %373 = vxpose.xlu0.b32.cont [3/16] 0.0, 128
    %374 = vxpose.xlu0.b32.cont [4/16] 0.0, 128
    %375 = vxpose.xlu0.b32.cont [5/16] 0.0, 128
    %376 = vxpose.xlu0.b32.cont [6/16] 0.0, 128
    %377 = vxpose.xlu0.b32.cont [7/16] 0.0, 128
    %378 = vxpose.xlu0.b32.cont [8/16] 0.0, 128
    %379 = vxpose.xlu0.b32.cont [9/16] 0.0, 128
    %380 = vxpose.xlu0.b32.cont [10/16] 0.0, 128
    %381 = vxpose.xlu0.b32.cont [11/16] 0.0, 128
    %382 = vxpose.xlu0.b32.cont [12/16] 0.0, 128
    %383 = vxpose.xlu0.b32.cont [13/16] 0.0, 128
    %384 = vxpose.xlu0.b32.cont [14/16] 0.0, 128
    %385 = vxpose.xlu0.b32.cont [15/16] 0.0, 128
    %386 = vxpose.xlu0.b32.end [16/16] 0.0, 128
    %v387 = vpop.trf.xlu0
    %v388 = vpop.trf.xlu0
    %v389 = vpop.trf.xlu0
    %v390 = vpop.trf.xlu0
    %v391 = vpop.trf.xlu0
    %v392 = vpop.trf.xlu0
    %v393 = vpop.trf.xlu0
    %v394 = vpop.trf.xlu0
    %v395 = vpop.trf.xlu0
    %v396 = vpop.trf.xlu0
    %v397 = vpop.trf.xlu0
    %v398 = vpop.trf.xlu0
    %v399 = vpop.trf.xlu0
    %v400 = vpop.trf.xlu0
    %v401 = vpop.trf.xlu0
    %v402 = vpop.trf.xlu0
    %403 = vxpose.xlu0.b32.start [1/16] %v178, 128
    %404 = vxpose.xlu0.b32.cont [2/16] 0.0, 128
    %405 = vxpose.xlu0.b32.cont [3/16] 0.0, 128
    %406 = vxpose.xlu0.b32.cont [4/16] 0.0, 128
    %407 = vxpose.xlu0.b32.cont [5/16] 0.0, 128
    %408 = vxpose.xlu0.b32.cont [6/16] 0.0, 128
    %409 = vxpose.xlu0.b32.cont [7/16] 0.0, 128
    %410 = vxpose.xlu0.b32.cont [8/16] 0.0, 128
    %411 = vxpose.xlu0.b32.cont [9/16] 0.0, 128
    %412 = vxpose.xlu0.b32.cont [10/16] 0.0, 128
    %413 = vxpose.xlu0.b32.cont [11/16] 0.0, 128
    %414 = vxpose.xlu0.b32.cont [12/16] 0.0, 128
    %415 = vxpose.xlu0.b32.cont [13/16] 0.0, 128
    %416 = vxpose.xlu0.b32.cont [14/16] 0.0, 128
    %417 = vxpose.xlu0.b32.cont [15/16] 0.0, 128
    %418 = vxpose.xlu0.b32.end [16/16] 0.0, 128
    %v419 = vpop.trf.xlu0
    %v420 = vpop.trf.xlu0
    %v421 = vpop.trf.xlu0
    %v422 = vpop.trf.xlu0
    %v423 = vpop.trf.xlu0
    %v424 = vpop.trf.xlu0
    %v425 = vpop.trf.xlu0
    %v426 = vpop.trf.xlu0
    %v427 = vpop.trf.xlu0
    %v428 = vpop.trf.xlu0
    %v429 = vpop.trf.xlu0
    %v430 = vpop.trf.xlu0
    %v431 = vpop.trf.xlu0
    %v432 = vpop.trf.xlu0
    %v433 = vpop.trf.xlu0
    %v434 = vpop.trf.xlu0
    %v443 = vcombine.low %v195, %v227
    %v444 = vcombine.low %v259, %v291
    %v446 = vunpack.c.l.s4 1983009808
    %v447 = vunpack.c.0.s8 %v446
    %v448 = vlaneseq
    %v449 = vshrl.u32 %v448, 7
    %v450 = vsub.s32 %v447, %v449
    %v451 = vrot.slane %v443, %v450
    %v453 = vunpack.c.l.s4 1983009808
    %v454 = vunpack.c.0.s8 %v453
    %v455 = vlaneseq
    %v456 = vshrl.u32 %v455, 7
    %v457 = vsub.s32 %v454, %v456
    %v458 = vrot.slane %v444, %v457
    %v459 = vcombine.low %v451, %v458
    %v460 = vcombine.low %v323, %v355
    %v461 = vcombine.low %v387, %v419
    %v463 = vunpack.c.l.s4 1983009808
    %v464 = vunpack.c.0.s8 %v463
    %v465 = vlaneseq
    %v466 = vshrl.u32 %v465, 7
    %v467 = vsub.s32 %v464, %v466
    %v468 = vrot.slane %v460, %v467
    %v470 = vunpack.c.l.s4 1983009808
    %v471 = vunpack.c.0.s8 %v470
    %v472 = vlaneseq
    %v473 = vshrl.u32 %v472, 7
    %v474 = vsub.s32 %v471, %v473
    %v475 = vrot.slane %v461, %v474
    %v476 = vcombine.low %v468, %v475
    %vm479 = vcmask 64512
    %480 = vst.msk [vmem:[%s1] sm:$0xff] %vm479, %v459
    %481 = vst.msk [vmem:[%s1 + $0x8] sm:$0xff] %vm479, %v476
    // Predicated region
    $region10: #{tpu_custom_call.1} parent=1 // pred_check
      _
    $region11: #{tpu_custom_call.1} parent=1 // pred_check_branch
      %483 = sbr.rel (0) target = $region13
    $region12: #{tpu_custom_call.1} parent=1 // pred_region
      _
    $region13: #{tpu_custom_call.1} parent=1 // pred_fallthru
      _
    // Predicated region
    $region14: #{tpu_custom_call.1} parent=1 // pred_check
      _
    $region15: #{tpu_custom_call.1} parent=1 // pred_check_branch
      %485 = sbr.rel (0) target = $region17
    $region16: #{tpu_custom_call.1} parent=1 // pred_region
      _
    $region17: #{tpu_custom_call.1} parent=1 // pred_fallthru
      _
    %486 = vsyncpa [#allocation3], 1

</llo_original>
